<compile_context>
chip_gen: v5e
topology: v5e:2x2
jax: 0.10.0
libtpu: 0.0.40
codegen_flags: <defaults>
</compile_context>

<pallas_src>
import functools

import jax
import jax.numpy as jnp
from jax import lax
from jax.experimental import pallas as pl
from jax.experimental.pallas import tpu as pltpu


# ----------------------------- kernel bodies -------------------------------


def _hard_one_hot(z, out_dtype):
    """Row-wise one_hot(argmax(z)) with first-occurrence tie-breaking
    (matches torch.max), fully vectorized over the (TB, Cp) block."""
    n = z.shape[-1]
    lane = lax.broadcasted_iota(jnp.int32, z.shape, dimension=1)
    z_max = jnp.max(z, axis=-1, keepdims=True)
    idx = jnp.min(jnp.where(z == z_max, lane, n), axis=-1, keepdims=True)
    return (lane == idx).astype(out_dtype)


def _train_kernel(logits_ref, u_ref, out_ref, *, eps):
    logits = logits_ref[...].astype(jnp.float32)
    u = u_ref[...]
    g = -jnp.log(eps - jnp.log(u + eps))          # Gumbel(0, 1)
    out_ref[...] = _hard_one_hot(logits + g, out_ref.dtype)


def _eval_kernel(logits_ref, out_ref):
    out_ref[...] = _hard_one_hot(logits_ref[...].astype(jnp.float32),
                                 out_ref.dtype)


# ----------------------------- tiling helpers ------------------------------


def _device_tuning():
    """(pipelined-VMEM budget bytes, minimum grid steps) per TPU generation."""
    try:
        kind = jax.devices()[0].device_kind.lower()
    except Exception:
        kind = ""
    if "v7" in kind:
        return 36 << 20, 8        # 64 MiB VMEM/TC, 2 TCs -> keep >=8 steps
    if "v6" in kind or "trillium" in kind:
        return 20 << 20, 4        # 32 MiB scoped default, 128 MiB physical
    if "v5 lite" in kind or "v5e" in kind or "v5litepod" in kind:
        return 10 << 20, 4        # 16 MiB scoped default -> stay well under
    return 12 << 20, 4            # unknown backend / interpret mode


def _pick_batch_tile(B, per_row_bytes, sublane_floor, budget_bytes,
                     min_grid_steps):
    """Largest batch tile that fits the pipelined-VMEM budget, floored to the
    dtype's sublane packing, keeping enough grid steps for megacore sharding."""
    tb = max(1, budget_bytes // max(1, per_row_bytes))
    if tb >= B:
        tb = B                    # full-extent block is always layout-legal
    else:
        tb = max(sublane_floor, (tb // sublane_floor) * sublane_floor)
    while tb > sublane_floor and pl.cdiv(B, tb) < min_grid_steps:
        nxt = max(sublane_floor, ((tb // 2) // sublane_floor) * sublane_floor)
        if nxt == tb:
            break
        tb = nxt
    return tb


# --------------------------------- wrapper ---------------------------------


def gumbel_softmax(logits, *, temperature=1.0, eps=1e-10, training=True,
                   key=None, seed=0):
    """logits: [batch, n_class] float. Returns one-hot samples, same dtype.

    `temperature` is accepted for API parity with the PyTorch module; the hard
    forward output is invariant to it (argmax is scale-invariant)."""
    del temperature
    if not jnp.issubdtype(logits.dtype, jnp.floating):
        raise ValueError("logits must be a floating-point array")
    B, C = logits.shape
    ldt = logits.dtype
    lbytes = jnp.dtype(ldt).itemsize

    # Lane-dense class dimension: pad to a multiple of 128 with the most
    # negative finite value (argmax never selects a padded lane).
    Cp = ((C + 127) // 128) * 128
    logits_p = logits if Cp == C else jnp.pad(
        logits, ((0, 0), (0, Cp - C)), constant_values=jnp.finfo(ldt).min)

    # Sublane floor by packing: 8 (f32), 16 (bf16/f16), 32 (int8/fp8).
    sublane_floor = 8 if lbytes >= 4 else (16 if lbytes == 2 else 32)

    # Pipelined VMEM per batch row: 2x double-buffered logits, 2x double-
    # buffered f32 uniforms (training only), 2x output, ~6 f32 temporaries.
    per_row = Cp * (2 * lbytes + (8 if training else 0) + 2 * lbytes + 6 * 4)
    budget, min_steps = _device_tuning()
    TB = _pick_batch_tile(B, per_row, sublane_floor, budget, min_steps)
    grid = (pl.cdiv(B, TB),)

    footprint = TB * per_row
    cparams = pltpu.CompilerParams(
        dimension_semantics=("parallel",),
        vmem_limit_bytes=int(min(48 << 20, max(footprint + (4 << 20), 16 << 20))),
    )

    if training:
        if key is None:
            key = jax.random.PRNGKey(seed)
        u = jax.random.uniform(key, (B, C), dtype=jnp.float32)
        u_p = u if Cp == C else jnp.pad(
            u, ((0, 0), (0, Cp - C)), constant_values=0.5)
        out = pl.pallas_call(
            functools.partial(_train_kernel, eps=float(eps)),
            out_shape=jax.ShapeDtypeStruct((B, Cp), ldt),
            grid=grid,
            in_specs=[pl.BlockSpec((TB, Cp), lambda i: (i, 0)),
                      pl.BlockSpec((TB, Cp), lambda i: (i, 0))],
            out_specs=pl.BlockSpec((TB, Cp), lambda i: (i, 0)),
            compiler_params=cparams,
        )(logits_p, u_p)
    else:
        out = pl.pallas_call(
            _eval_kernel,
            out_shape=jax.ShapeDtypeStruct((B, Cp), ldt),
            grid=grid,
            in_specs=[pl.BlockSpec((TB, Cp), lambda i: (i, 0))],
            out_specs=pl.BlockSpec((TB, Cp), lambda i: (i, 0)),
            compiler_params=cparams,
        )(logits_p)

    return out if Cp == C else out[:, :C]


# ----------------------------------- test -----------------------------------


if __name__ == "__main__":
    key = jax.random.PRNGKey(0)
    batch, n_class = 8, 16
    eps = 1e-10
    logits = jax.random.normal(key, (batch, n_class), dtype=jnp.float32)

    # training-mode forward: one-hot rows
    y = jax.block_until_ready(
        gumbel_softmax(logits, temperature=1.0, eps=eps, training=True, seed=0))
    assert y.shape == (batch, n_class)
    assert bool(jnp.all((y == 0.0) | (y == 1.0)))
    assert bool(jnp.allclose(jnp.sum(y, axis=-1), 1.0))

    # matches a pure-JAX reference fed the same uniforms
    u_ref = jax.random.uniform(jax.random.PRNGKey(0), (batch, n_class),
                               dtype=jnp.float32)
    g_ref = -jnp.log(eps - jnp.log(u_ref + eps))
    expect = jax.nn.one_hot(jnp.argmax(logits + g_ref, axis=-1), n_class,
                            dtype=logits.dtype)
    assert bool(jnp.array_equal(y, expect))

    # deterministic given the same seed
    y2 = jax.block_until_ready(
        gumbel_softmax(logits, temperature=1.0, eps=eps, training=True, seed=0))
    assert bool(jnp.array_equal(y, y2))

    # eval-mode forward matches plain-JAX reference exactly
    y_eval = jax.block_until_ready(gumbel_softmax(logits, training=False))
    ref = jax.nn.one_hot(jnp.argmax(logits, axis=-1), n_class,
                         dtype=logits.dtype)
    assert bool(jnp.array_equal(y_eval, ref))

    print("KERNEL_OK")
</pallas_src>

<mosaic_0001>
module attributes {stable_mosaic.version = 11 : i64} {
  func.func @_train_kernel(%arg0: i32, %arg1: memref<8x128xf32, #tpu.memory_space<vmem>>, %arg2: memref<8x128xf32, #tpu.memory_space<vmem>>, %arg3: memref<8x128xf32, #tpu.memory_space<vmem>>) attributes {dimension_semantics = [#tpu.dimension_semantics<parallel>], iteration_bounds = array<i64: 1>, scalar_prefetch = 0 : i64, scratch_operands = 0 : i64, tpu.core_type = #tpu.core_type<tc>, window_params = [{transform_indices = @transform_0, window_bounds = array<i64: 8, 128>}, {transform_indices = @transform_1, window_bounds = array<i64: 8, 128>}, {transform_indices = @transform_2, window_bounds = array<i64: 8, 128>}]} {
    %c0 = arith.constant 0 : index
    %c0_0 = arith.constant 0 : index
    %0 = vector.load %arg1[%c0, %c0_0] : memref<8x128xf32, #tpu.memory_space<vmem>>, vector<8x128xf32>
    %c0_1 = arith.constant 0 : index
    %c0_2 = arith.constant 0 : index
    %1 = vector.load %arg2[%c0_1, %c0_2] : memref<8x128xf32, #tpu.memory_space<vmem>>, vector<8x128xf32>
    %cst = arith.constant 1.000000e-10 : f32
    %2 = vector.broadcast %cst : f32 to vector<8x128xf32>
    %3 = arith.addf %1, %2 : vector<8x128xf32>
    %4 = math.log %3 : vector<8x128xf32>
    %cst_3 = arith.constant 1.000000e-10 : f32
    %5 = vector.broadcast %cst_3 : f32 to vector<8x128xf32>
    %6 = arith.subf %5, %4 : vector<8x128xf32>
    %7 = math.log %6 : vector<8x128xf32>
    %cst_4 = arith.constant 0.000000e+00 : f32
    %8 = vector.broadcast %cst_4 : f32 to vector<8x128xf32>
    %9 = arith.subf %8, %7 : vector<8x128xf32>
    %10 = arith.addf %0, %9 : vector<8x128xf32>
    %11 = tpu.iota {dimensions = array<i32: 1>} : vector<8x128xi32>
    %cst_5 = arith.constant dense<0xFF800000> : vector<8xf32>
    %12 = vector.multi_reduction <maximumf>, %10, %cst_5 [1] : vector<8x128xf32> to vector<8xf32>
    %13 = vector.shape_cast %12 : vector<8xf32> to vector<8x1xf32>
    %14 = vector.broadcast %13 : vector<8x1xf32> to vector<8x128xf32>
    %15 = arith.cmpf oeq, %10, %14 : vector<8x128xf32>
    %c128_i32 = arith.constant 128 : i32
    %16 = vector.broadcast %c128_i32 : i32 to vector<8x128xi32>
    %17 = arith.select %15, %11, %16 : vector<8x128xi1>, vector<8x128xi32>
    %cst_6 = arith.constant dense<2147483647> : vector<8xi32>
    %18 = vector.multi_reduction <minsi>, %17, %cst_6 [1] : vector<8x128xi32> to vector<8xi32>
    %19 = vector.shape_cast %18 : vector<8xi32> to vector<8x1xi32>
    %20 = vector.broadcast %19 : vector<8x1xi32> to vector<8x128xi32>
    %21 = arith.cmpi eq, %11, %20 : vector<8x128xi32>
    %22 = arith.extui %21 : vector<8x128xi1> to vector<8x128xi32>
    %23 = arith.sitofp %22 : vector<8x128xi32> to vector<8x128xf32>
    %c0_7 = arith.constant 0 : index
    %c0_8 = arith.constant 0 : index
    %24 = vector.load %arg3[%c0_7, %c0_8] : memref<8x128xf32, #tpu.memory_space<vmem>>, vector<8x128xf32>
    tpu.vector_store %arg3[%c0_7, %c0_8], %23 {strides = array<i32>} : memref<8x128xf32, #tpu.memory_space<vmem>>, vector<8x128xf32>,
    return
  }
  func.func @transform_0(%arg0: i32) -> (i32, i32) {
    %c0_i32 = arith.constant 0 : i32
    %c0_i32_0 = arith.constant 0 : i32
    return %arg0, %c0_i32 : i32, i32
  }
  func.func @transform_1(%arg0: i32) -> (i32, i32) {
    %c0_i32 = arith.constant 0 : i32
    %c0_i32_0 = arith.constant 0 : i32
    return %arg0, %c0_i32 : i32, i32
  }
  func.func @transform_2(%arg0: i32) -> (i32, i32) {
    %c0_i32 = arith.constant 0 : i32
    %c0_i32_0 = arith.constant 0 : i32
    return %arg0, %c0_i32 : i32, i32
  }
}

</mosaic_0001>

<llo_original>
// kernel: tpu_custom_call.1
$region0: #{tpu_custom_call.1}
  #allocation0 [shape = 'u32[]', space=smem, size = 0x4, offset = 0x4, fixed_abs, tag = 'smem constant byte address 0x4 - core index']
  #allocation1 [shape = 'u32[72,128]{1,0:T(1,128)}', space=vmem, size = 0x9000, scoped, tag = 'internal scratch']
  %s0 = inlined_call_operand.hbm [shape: f32[8,128], index: 0, kind: input, shape index: {}]
  %s1 = inlined_call_operand.hbm [shape: f32[8,128], index: 1, kind: input, shape index: {}]
  %s2 = inlined_call_operand.hbm [shape: f32[8,128], index: 2, kind: output, shape index: {}]
  %s3 = sld [smem:[#allocation0]]
  $region26: #{tpu_custom_call.1} parent=0
    _
  %s5 = ssub.s32 1, %s3
  %s6 = scalar_select 0, %s5, %s3
  $region1: #{tpu_custom_call.1} parent=0
    #allocation2 [shape = 'u8[4096]{0}', space=vmem, size = 0x1000, scoped, tag = 'input window, operand 0, single buffered']
    #allocation3 [shape = 's32[1]{0}', space=sflag, size = 0x4, scoped, tag = 'scoped memory for tpu_custom_call.1']
    #allocation4 [shape = 's32[1]{0}', space=sflag, size = 0x4, scoped, tag = 'scoped memory for tpu_custom_call.1']
    #allocation5 [shape = 'u8[4096]{0}', space=vmem, size = 0x1000, scoped, tag = 'input window, operand 1, single buffered']
    #allocation6 [shape = 's32[1]{0}', space=sflag, size = 0x4, scoped, tag = 'scoped memory for tpu_custom_call.1']
    #allocation7 [shape = 'u8[4096]{0}', space=vmem, size = 0x1000, scoped, tag = 'output window, operand 0, single buffered']
    %7 = vsyncpa [#allocation3], 0
    %8 = vsyncpa [#allocation6], 0
    %9 = vsyncpa [#allocation4], 0
    // Predicated region
    $region2: #{tpu_custom_call.1} parent=1 // pred_check
      _
    $region3: #{tpu_custom_call.1} parent=1 // pred_check_branch
      %11 = sbr.rel (0) target = $region5
    $region4: #{tpu_custom_call.1} parent=1 // pred_region
      %13 = vsyncadd [#allocation3], 0
      %s15 = sshll.u32 %s0, 4
      %s16 = int_to_ptr.hbm [resolvable:$true] %s15
      %s17 = sshll.u32 [#allocation2], 4
      %s18 = int_to_ptr.vmem [resolvable:$true] %s17
      %20 = dma.hbm_to_vmem [thread:$0]  %s16, 128, %s18, [#allocation3]
    $region5: #{tpu_custom_call.1} parent=1 // pred_fallthru
      _
    // Predicated region
    $region6: #{tpu_custom_call.1} parent=1 // pred_check
      _
    $region7: #{tpu_custom_call.1} parent=1 // pred_check_branch
      %22 = sbr.rel (0) target = $region9
    $region8: #{tpu_custom_call.1} parent=1 // pred_region
      %24 = vsyncadd [#allocation6], 0
      %s26 = sshll.u32 %s1, 4
      %s27 = int_to_ptr.hbm [resolvable:$true] %s26
      %s28 = sshll.u32 [#allocation5], 4
      %s29 = int_to_ptr.vmem [resolvable:$true] %s28
      %31 = dma.hbm_to_vmem [thread:$0]  %s27, 128, %s29, [#allocation6]
    $region9: #{tpu_custom_call.1} parent=1 // pred_fallthru
      _
    // Predicated region
    $region10: #{tpu_custom_call.1} parent=1 // pred_check
      _
    $region11: #{tpu_custom_call.1} parent=1 // pred_check_branch
      %33 = sbr.rel (0) target = $region13
    $region12: #{tpu_custom_call.1} parent=1 // pred_region
      %35 = dma.done [#allocation3], 128
    $region13: #{tpu_custom_call.1} parent=1 // pred_fallthru
      _
    // Predicated region
    $region14: #{tpu_custom_call.1} parent=1 // pred_check
      _
    $region15: #{tpu_custom_call.1} parent=1 // pred_check_branch
      %37 = sbr.rel (0) target = $region17
    $region16: #{tpu_custom_call.1} parent=1 // pred_region
      %39 = dma.done [#allocation6], 128
    $region17: #{tpu_custom_call.1} parent=1 // pred_fallthru
      _
    %v40 = vld [vmem:[#allocation2] sm:$0xff]
    %v41 = vld [vmem:[#allocation5] sm:$0xff]
    %v42 = vadd.f32 %v41, 1e-10
    %v43 = vlog2.pop %v42
    %v44 = vmul.f32 %v43, 0.6931472
    %v45 = vsub.f32 1e-10, %v44
    %v46 = vlog2.pop %v45
    %v47 = vmul.f32 %v46, 0.6931472
    %v48 = vsub.f32 0.0, %v47
    %v49 = vadd.f32 %v40, %v48
    %v50 = vlaneseq
    %v51 = vand.u32 %v50, 127
    %52 = vmax.xlane.f32.xlu0 %v49
    %v53 = vpop.xlane.xlu0 %52
    %vm54 = vcmp.eq.f32.partialorder %v49, %v53
    %v55 = vsel %vm54, %v51, 128
    %v56 = vand.u32 %v55, 65535
    %v57 = vshra.s32 %v55, 16
    %v58 = vcvt.s32.f32 %v56
    %v59 = vcvt.s32.f32 %v57
    %60 = vmin.xlane.f32.xlu0 %v59
    %v61 = vpop.xlane.xlu0 %60
    %vm62 = vcmp.eq.f32.partialorder %v59, %v61
    %v63 = vsel %vm62, %v58, inf
    %64 = vmin.xlane.f32.xlu0 %v63
    %v65 = vpop.xlane.xlu0 %64
    %v66 = vcvt.f32.s32 %v65
    %v67 = vcvt.f32.s32 %v61
    %v68 = vshll.u32 %v67, 16
    %v69 = vadd.s32 %v68, %v66
    %vm70 = vcmp.eq.s32.totalorder %v51, %v69
    %v71 = vsel %vm70, 1, 0
    %v72 = vcvt.s32.f32 %v71
    %73 = vst [vmem:[#allocation7] sm:$0xff] %v72
    // Predicated region
    $region18: #{tpu_custom_call.1} parent=1 // pred_check
      _
    $region19: #{tpu_custom_call.1} parent=1 // pred_check_branch
      %75 = sbr.rel (0) target = $region21
    $region20: #{tpu_custom_call.1} parent=1 // pred_region
      %77 = vsyncadd [#allocation4], 0
      %s79 = sshll.u32 [#allocation7], 4
      %s80 = int_to_ptr.vmem [resolvable:$true] %s79
      %s81 = sshll.u32 %s2, 4
      %s82 = int_to_ptr.hbm [resolvable:$true] %s81
      %84 = dma.vmem_to_hbm [thread:$0]  %s80, 128, %s82, [#allocation4]
    $region21: #{tpu_custom_call.1} parent=1 // pred_fallthru
      _
    // Predicated region
    $region22: #{tpu_custom_call.1} parent=1 // pred_check
      _
    $region23: #{tpu_custom_call.1} parent=1 // pred_check_branch
      %86 = sbr.rel (0) target = $region25
    $region24: #{tpu_custom_call.1} parent=1 // pred_region
      %88 = dma.done [#allocation4], 128
    $region25: #{tpu_custom_call.1} parent=1 // pred_fallthru
      _
    %89 = vsyncpa [#allocation3], 1
    %90 = vsyncpa [#allocation6], 1
    %91 = vsyncpa [#allocation4], 1

</llo_original>
